<compile_context>
chip_gen: v5e
topology: v5e:2x2
jax: 0.10.0
libtpu: 0.0.40
codegen_flags: <defaults>
</compile_context>

<pallas_src>
import jax
import jax.numpy as jnp
from jax.experimental import pallas as pl
from jax.experimental.pallas import tpu as pltpu


# ----------------------------------------------------------------------------
# Fused kernel: one batch element per grid step.
#   out[b] = ReLU( x[b] @ Wa + mean(x[b], axis=0) @ Wm + h[b] @ Wh + bias )
# ----------------------------------------------------------------------------
def _fused_relation_kernel(x_ref, h_ref, wa_ref, wm_ref, wh_ref, b_ref, o_ref):
    # x_ref : (1, L, D)  activation tile for batch b (native dtype)
    # h_ref : (1, 1, H)  hidden_cat row for batch b
    # wa_ref: (D, D)     W.T rows acting on x_i          (resident)
    # wm_ref: (D, D)     W.T rows acting on mean_j x_j   (resident)
    # wh_ref: (H, D)     W.T rows acting on hidden_cat   (resident)
    # b_ref : (1, D)     bias (f32, resident)
    # o_ref : (1, L, D)  output tile
    x = x_ref[0]                                                      # (L, D)

    # Mean over rows (sublane reduction -> XLU slot); accumulate in f32, then
    # cast back so the MXU operand stays in the activation dtype.
    mean_x = jnp.mean(x.astype(jnp.float32), axis=0, keepdims=True)   # (1, D) f32
    mean_x = mean_x.astype(x.dtype)

    h = h_ref[0]                                                      # (1, H)

    # Row-independent term z (1, D), f32 accumulation.
    z = (jnp.dot(mean_x, wm_ref[...], preferred_element_type=jnp.float32)
         + jnp.dot(h, wh_ref[...], preferred_element_type=jnp.float32)
         + b_ref[...].astype(jnp.float32))

    # Per-row term + fuse + ReLU.
    y = jnp.dot(x, wa_ref[...], preferred_element_type=jnp.float32) + z   # (L, D)
    o_ref[0] = jnp.maximum(y, 0.0).astype(o_ref.dtype)


# ----------------------------------------------------------------------------
# Parameter preparation (do ONCE per set of weights, outside the hot path).
# ----------------------------------------------------------------------------
def prepare_params(weight, bias, dim_relation, *, dtype=None):
    """weight: (D, 2D+H) PyTorch Linear layout [out, in]; bias: (D,).

    Splits W.T into the pieces acting on x, mean(x) and hidden, cast to the
    activation dtype (pass dtype=x.dtype) so e.g. bf16 inputs keep bf16 MXU
    operands. Bias stays f32: it only adds into the f32 accumulator.
    """
    D = dim_relation
    assert weight.shape[0] == D, "Linear out-dim must equal dim_relation"
    assert weight.shape[1] >= 2 * D, "Linear in-dim must be >= 2*dim_relation"
    w_t = weight.T                                # (2D+H, D)
    if dtype is not None:
        w_t = w_t.astype(dtype)
    w_a = w_t[:D]                                 # (D, D)  acts on x[b, i]
    w_m = w_t[D:2 * D]                            # (D, D)  acts on mean_j x[b, j]
    w_h = w_t[2 * D:]                             # (H, D)  acts on hidden_cat[b]
    bias_row = bias.astype(jnp.float32).reshape(1, D)
    return w_a, w_m, w_h, bias_row


# ----------------------------------------------------------------------------
# Forward pass: one pallas_call, grid over the batch.
# ----------------------------------------------------------------------------
@jax.jit
def fuse_relation_network(hidden0, hidden1, x, w_a, w_m, w_h, bias_row):
    """hidden0/hidden1: [B, H/2]; x: [B, L, D]; params from prepare_params().
    Returns relation: [B, L, D]."""
    B, L, D = x.shape
    H = hidden0.shape[-1] + hidden1.shape[-1]
    assert w_a.shape == (D, D) and w_m.shape == (D, D) and w_h.shape == (H, D)
    assert bias_row.shape == (1, D)
    assert w_a.dtype == x.dtype, "call prepare_params(..., dtype=x.dtype)"

    # Tiny O(B*H) concat; all O(B*L*D) work happens inside the single kernel.
    h_cat = jnp.concatenate([hidden0, hidden1], axis=-1).reshape(B, 1, H)

    return pl.pallas_call(
        _fused_relation_kernel,
        out_shape=jax.ShapeDtypeStruct((B, L, D), x.dtype),
        grid=(B,),
        in_specs=[
            pl.BlockSpec((1, L, D), lambda b: (b, 0, 0)),   # x[b]   (read once)
            pl.BlockSpec((1, 1, H), lambda b: (b, 0, 0)),   # hidden_cat[b]
            pl.BlockSpec((D, D), lambda b: (0, 0)),         # Wa (resident)
            pl.BlockSpec((D, D), lambda b: (0, 0)),         # Wm (resident)
            pl.BlockSpec((H, D), lambda b: (0, 0)),         # Wh (resident)
            pl.BlockSpec((1, D), lambda b: (0, 0)),         # bias (resident)
        ],
        out_specs=pl.BlockSpec((1, L, D), lambda b: (b, 0, 0)),
        compiler_params=pltpu.CompilerParams(
            dimension_semantics=("parallel",)),   # v7x megacore: batch splits across TCs
    )(x, h_cat, w_a, w_m, w_h, bias_row)


# ----------------------------------------------------------------------------
# Pure-JAX transcription of the PyTorch forward (validation reference).
# ----------------------------------------------------------------------------
def _reference_forward(hidden0, hidden1, x, weight, bias):
    h = jnp.concatenate([hidden0, hidden1], axis=-1)              # [B, H]
    B, L, D = x.shape
    a_ext = jnp.broadcast_to(x[:, :, None, :], (B, L, L, D))
    b_ext = jnp.broadcast_to(x[:, None, :, :], (B, L, L, D))
    h_ext = jnp.broadcast_to(h[:, None, None, :], (B, L, L, h.shape[-1]))
    fused = jnp.concatenate([a_ext, b_ext, h_ext], axis=-1).mean(axis=2)
    y = fused @ weight.T + bias
    return jnp.maximum(y, 0.0)


if __name__ == "__main__":
    B, L, D = 2, 8, 32          # batch, seq length, dim_relation
    H = D                       # 'cat' fuse => hidden cat dim == dim_relation

    key = jax.random.PRNGKey(0)
    k1, k2, k3, k4, k5 = jax.random.split(key, 5)
    hidden0 = jax.random.normal(k1, (B, H // 2), dtype=jnp.float32)
    hidden1 = jax.random.normal(k2, (B, H // 2), dtype=jnp.float32)
    x = jax.random.normal(k3, (B, L, D), dtype=jnp.float32)

    # Deterministic "Linear(3*D, D)" parameters (PyTorch layout: [out, in]).
    bound = 1.0 / jnp.sqrt(3.0 * D)
    weight = jax.random.uniform(k4, (D, 3 * D), dtype=jnp.float32,
                                minval=-bound, maxval=bound)
    bias = jax.random.uniform(k5, (D,), dtype=jnp.float32,
                              minval=-bound, maxval=bound)

    # One-time weight prep (transpose / split / dtype cast) outside the hot path.
    w_a, w_m, w_h, bias_row = prepare_params(weight, bias, D, dtype=x.dtype)

    out = fuse_relation_network(hidden0, hidden1, x, w_a, w_m, w_h, bias_row)
    jax.block_until_ready(out)

    ref = _reference_forward(hidden0, hidden1, x, weight, bias)
    assert out.shape == (B, L, D)
    assert jnp.allclose(out, ref, atol=1e-3, rtol=1e-3), "mismatch vs reference"

    print("KERNEL_OK")
</pallas_src>

<mosaic_0001>
module attributes {stable_mosaic.version = 11 : i64} {
  func.func @_fused_relation_kernel(%arg0: i32, %arg1: memref<1x8x32xf32, #tpu.memory_space<vmem>>, %arg2: memref<1x1x32xf32, #tpu.memory_space<vmem>>, %arg3: memref<32x32xf32, #tpu.memory_space<vmem>>, %arg4: memref<32x32xf32, #tpu.memory_space<vmem>>, %arg5: memref<32x32xf32, #tpu.memory_space<vmem>>, %arg6: memref<1x32xf32, #tpu.memory_space<vmem>>, %arg7: memref<1x8x32xf32, #tpu.memory_space<vmem>>) attributes {dimension_semantics = [#tpu.dimension_semantics<parallel>], iteration_bounds = array<i64: 2>, scalar_prefetch = 0 : i64, scratch_operands = 0 : i64, tpu.core_type = #tpu.core_type<tc>, window_params = [{transform_indices = @transform_0, window_bounds = array<i64: 1, 8, 32>}, {transform_indices = @transform_1, window_bounds = array<i64: 1, 1, 32>}, {pipeline_mode = #tpu.pipeline_mode<synchronous>, transform_indices = @transform_2, window_bounds = array<i64: 32, 32>}, {pipeline_mode = #tpu.pipeline_mode<synchronous>, transform_indices = @transform_3, window_bounds = array<i64: 32, 32>}, {pipeline_mode = #tpu.pipeline_mode<synchronous>, transform_indices = @transform_4, window_bounds = array<i64: 32, 32>}, {pipeline_mode = #tpu.pipeline_mode<synchronous>, transform_indices = @transform_5, window_bounds = array<i64: 1, 32>}, {transform_indices = @transform_6, window_bounds = array<i64: 1, 8, 32>}]} {
    %c0 = arith.constant 0 : index
    %c0_0 = arith.constant 0 : index
    %c0_1 = arith.constant 0 : index
    %0 = vector.load %arg1[%c0, %c0_0, %c0_1] : memref<1x8x32xf32, #tpu.memory_space<vmem>>, vector<1x8x32xf32>
    %1 = vector.shape_cast %0 : vector<1x8x32xf32> to vector<8x32xf32>
    %cst = arith.constant dense<0.000000e+00> : vector<32xf32>
    %2 = vector.multi_reduction <add>, %1, %cst [0] : vector<8x32xf32> to vector<32xf32>
    %3 = vector.shape_cast %2 : vector<32xf32> to vector<1x32xf32>
    %cst_2 = arith.constant 8.000000e+00 : f32
    %4 = vector.broadcast %cst_2 : f32 to vector<1x32xf32>
    %5 = arith.divf %3, %4 : vector<1x32xf32>
    %c0_3 = arith.constant 0 : index
    %c0_4 = arith.constant 0 : index
    %c0_5 = arith.constant 0 : index
    %6 = vector.load %arg2[%c0_3, %c0_4, %c0_5] : memref<1x1x32xf32, #tpu.memory_space<vmem>>, vector<1x1x32xf32>
    %7 = vector.shape_cast %6 : vector<1x1x32xf32> to vector<1x32xf32>
    %c0_6 = arith.constant 0 : index
    %c0_7 = arith.constant 0 : index
    %8 = vector.load %arg4[%c0_6, %c0_7] : memref<32x32xf32, #tpu.memory_space<vmem>>, vector<32x32xf32>
    %cst_8 = arith.constant dense<0.000000e+00> : vector<1x32xf32>
    %9 = tpu.matmul %5, %8, %cst_8 {dimension_numbers = #tpu.dot_dimension_numbers<[1], [0], [0], [1], [0, 0, 1, 1], [], []>} : vector<1x32xf32>, vector<32x32xf32>, vector<1x32xf32> -> vector<1x32xf32>
    %c0_9 = arith.constant 0 : index
    %c0_10 = arith.constant 0 : index
    %10 = vector.load %arg5[%c0_9, %c0_10] : memref<32x32xf32, #tpu.memory_space<vmem>>, vector<32x32xf32>
    %cst_11 = arith.constant dense<0.000000e+00> : vector<1x32xf32>
    %11 = tpu.matmul %7, %10, %cst_11 {dimension_numbers = #tpu.dot_dimension_numbers<[1], [0], [0], [1], [0, 0, 1, 1], [], []>} : vector<1x32xf32>, vector<32x32xf32>, vector<1x32xf32> -> vector<1x32xf32>
    %12 = arith.addf %9, %11 : vector<1x32xf32>
    %c0_12 = arith.constant 0 : index
    %c0_13 = arith.constant 0 : index
    %13 = vector.load %arg6[%c0_12, %c0_13] : memref<1x32xf32, #tpu.memory_space<vmem>>, vector<1x32xf32>
    %14 = arith.addf %12, %13 : vector<1x32xf32>
    %c0_14 = arith.constant 0 : index
    %c0_15 = arith.constant 0 : index
    %15 = vector.load %arg3[%c0_14, %c0_15] : memref<32x32xf32, #tpu.memory_space<vmem>>, vector<32x32xf32>
    %cst_16 = arith.constant dense<0.000000e+00> : vector<8x32xf32>
    %16 = tpu.matmul %1, %15, %cst_16 {dimension_numbers = #tpu.dot_dimension_numbers<[1], [0], [0], [1], [0, 0, 1, 1], [], []>} : vector<8x32xf32>, vector<32x32xf32>, vector<8x32xf32> -> vector<8x32xf32>
    %17 = vector.broadcast %14 : vector<1x32xf32> to vector<8x32xf32>
    %18 = arith.addf %16, %17 : vector<8x32xf32>
    %cst_17 = arith.constant 0.000000e+00 : f32
    %19 = vector.broadcast %cst_17 : f32 to vector<8x32xf32>
    %20 = arith.maximumf %18, %19 : vector<8x32xf32>
    %c0_18 = arith.constant 0 : index
    %c0_19 = arith.constant 0 : index
    %c0_20 = arith.constant 0 : index
    %21 = vector.load %arg7[%c0_18, %c0_19, %c0_20] : memref<1x8x32xf32, #tpu.memory_space<vmem>>, vector<1x8x32xf32>
    %22 = vector.shape_cast %21 : vector<1x8x32xf32> to vector<8x32xf32>
    %23 = vector.shape_cast %20 : vector<8x32xf32> to vector<1x8x32xf32>
    tpu.vector_store %arg7[%c0_18, %c0_19, %c0_20], %23 {strides = array<i32>} : memref<1x8x32xf32, #tpu.memory_space<vmem>>, vector<1x8x32xf32>,
    return
  }
  func.func @transform_0(%arg0: i32) -> (i32, i32, i32) {
    %c0_i32 = arith.constant 0 : i32
    %c0_i32_0 = arith.constant 0 : i32
    %c0_i32_1 = arith.constant 0 : i32
    return %arg0, %c0_i32, %c0_i32_0 : i32, i32, i32
  }
  func.func @transform_1(%arg0: i32) -> (i32, i32, i32) {
    %c0_i32 = arith.constant 0 : i32
    %c0_i32_0 = arith.constant 0 : i32
    %c0_i32_1 = arith.constant 0 : i32
    return %arg0, %c0_i32, %c0_i32_0 : i32, i32, i32
  }
  func.func @transform_2(%arg0: i32) -> (i32, i32) {
    %c0_i32 = arith.constant 0 : i32
    %c0_i32_0 = arith.constant 0 : i32
    %c0_i32_1 = arith.constant 0 : i32
    return %c0_i32, %c0_i32_0 : i32, i32
  }
  func.func @transform_3(%arg0: i32) -> (i32, i32) {
    %c0_i32 = arith.constant 0 : i32
    %c0_i32_0 = arith.constant 0 : i32
    %c0_i32_1 = arith.constant 0 : i32
    return %c0_i32, %c0_i32_0 : i32, i32
  }
  func.func @transform_4(%arg0: i32) -> (i32, i32) {
    %c0_i32 = arith.constant 0 : i32
    %c0_i32_0 = arith.constant 0 : i32
    %c0_i32_1 = arith.constant 0 : i32
    return %c0_i32, %c0_i32_0 : i32, i32
  }
  func.func @transform_5(%arg0: i32) -> (i32, i32) {
    %c0_i32 = arith.constant 0 : i32
    %c0_i32_0 = arith.constant 0 : i32
    %c0_i32_1 = arith.constant 0 : i32
    return %c0_i32, %c0_i32_0 : i32, i32
  }
  func.func @transform_6(%arg0: i32) -> (i32, i32, i32) {
    %c0_i32 = arith.constant 0 : i32
    %c0_i32_0 = arith.constant 0 : i32
    %c0_i32_1 = arith.constant 0 : i32
    return %arg0, %c0_i32, %c0_i32_0 : i32, i32, i32
  }
}

</mosaic_0001>

<llo_original>
// kernel: fuse_relation_network.1
$region0: #{fuse_relation_network.1}
  #allocation0 [shape = 'u32[]', space=smem, size = 0x4, offset = 0x4, fixed_abs, tag = 'smem constant byte address 0x4 - core index']
  #allocation1 [shape = 'u32[72,128]{1,0:T(1,128)}', space=vmem, size = 0x9000, scoped, tag = 'internal scratch']
  %s0 = inlined_call_operand.hbm [shape: f32[2,8,32], index: 0, kind: input, shape index: {}]
  %s1 = inlined_call_operand.vmem [shape: f32[2,1,32], index: 1, kind: input, shape index: {}]
  %s2 = inlined_call_operand.hbm [shape: f32[32,32], index: 2, kind: input, shape index: {}]
  %s3 = inlined_call_operand.hbm [shape: f32[32,32], index: 3, kind: input, shape index: {}]
  %s4 = inlined_call_operand.hbm [shape: f32[32,32], index: 4, kind: input, shape index: {}]
  %s5 = inlined_call_operand.vmem [shape: f32[1,32], index: 5, kind: input, shape index: {}]
  %s6 = inlined_call_operand.hbm [shape: f32[2,8,32], index: 6, kind: output, shape index: {}]
  %s7 = sld [smem:[#allocation0]]
  $region73: #{fuse_relation_network.1} parent=0
    _
  %s9 = ssub.s32 1, %s7
  %s10 = scalar_select 0, %s9, %s7
  $region1: #{fuse_relation_network.1} parent=0
    #allocation2 [shape = 'u8[8192]{0}', space=vmem, size = 0x2000, scoped, tag = 'input window, operand 0']
    #allocation3 [shape = 's32[2]{0}', space=sflag, size = 0x8, scoped, tag = 'scoped memory for fuse_relation_network.1']
    #allocation4 [shape = 's32[2]{0}', space=sflag, size = 0x8, scoped, tag = 'scoped memory for fuse_relation_network.1']
    #allocation5 [shape = 'u8[16384]{0}', space=vmem, size = 0x4000, scoped, tag = 'input window, operand 2, single buffered']
    #allocation6 [shape = 's32[1]{0}', space=sflag, size = 0x4, scoped, tag = 'scoped memory for fuse_relation_network.1']
    #allocation7 [shape = 'u8[16384]{0}', space=vmem, size = 0x4000, scoped, tag = 'input window, operand 3, single buffered']
    #allocation8 [shape = 'u8[16384]{0}', space=vmem, size = 0x4000, scoped, tag = 'input window, operand 4, single buffered']
    #allocation9 [shape = 's32[1]{0}', space=sflag, size = 0x4, scoped, tag = 'scoped memory for fuse_relation_network.1']
    #allocation10 [shape = 'u8[8192]{0}', space=vmem, size = 0x2000, scoped, tag = 'output window, operand 0']
    %11 = vsyncpa [#allocation3], 0
    %s12 = scalar_lea.sflag [#allocation3], 1
    %13 = vsyncpa %s12, 0
    %14 = vsyncpa [#allocation6], 0
    %15 = vsyncpa [#allocation9], 0
    %16 = vsyncpa [#allocation4], 0
    %s17 = scalar_lea.sflag [#allocation4], 1
    %18 = vsyncpa %s17, 0
    loop: start=0, step=1, limit=4
    $region2: #{fuse_relation_network.1} parent=1 // loop_pre_header
      _
    $region3: #{fuse_relation_network.1} parent=1 // loop_header
      %s20 = sphi 0, %s24
      %p21 = scmp.ge.s32.totalorder %s20, 4
      %s30 = sphi 0, %s32
      %s33 = sphi 0, %s30
      %s34 = sphi 0, %s33
      %s50 = sphi 0, %s34
      %s56 = sphi 0, %s58
      %s59 = sphi 0, %s56
      %s60 = sphi 0, %s59
      %s76 = sphi 0, %s60
      %s80 = sphi 0, %s80
      %s82 = sphi 0, %s80
      %s83 = sphi 0, %s82
      %s97 = sphi 0, %s83
      %s101 = sphi 0, %s101
      %s103 = sphi 0, %s101
      %s104 = sphi 0, %s103
      %s118 = sphi 0, %s104
      %s122 = sphi 0, %s122
      %s124 = sphi 0, %s122
      %s125 = sphi 0, %s124
      %s139 = sphi 0, %s125
      %s143 = sphi 0, %s143
      %s145 = sphi 0, %s143
      %s146 = sphi 0, %s145
      %s160 = sphi 0, %s146
      %s166 = sphi 0, %s168
      %s169 = sphi 0, %s166
      %s170 = sphi 0, %s169
      %s186 = sphi 0, %s170
    $region4: #{fuse_relation_network.1} parent=1 // loop_header_branch
      %23 = sbr.rel (%p21) target = $region8
    $region5: #{fuse_relation_network.1} parent=1 // loop_body
      %s25 = ssub.s32 %s20, 1
      %s26 = ssub.s32 %s20, 2
      %s27 = sadd.s32 %s20, 1
      %s28 = ssub.s32 %s20, %s27
      %p29 = scmp.eq.s32.totalorder %s28, 0
      %s31 = sadd.s32 %s30, 1
      %s32 = scalar_select %p29, %s30, %s31
      %p35 = pneg %p29
      %p36 = scmp.eq.s32.totalorder %s20, 1
      %p37 = por %p35, %p36
      %p38 = scmp.ne.s32.totalorder %s30, %s33
      %p39 = scmp.eq.s32.totalorder %s20, 0
      %p40 = por %p38, %p39
      %p41 = scmp.ne.s32.totalorder %s30, %s33
      %p42 = scmp.eq.s32.totalorder %s25, 1
      %p43 = por %p41, %p42
      %p44 = scmp.ne.s32.totalorder %s33, %s34
      %p45 = scmp.eq.s32.totalorder %s25, 0
      %p46 = por %p44, %p45
      %p47 = scmp.ne.s32.totalorder %s33, %s34
      %p48 = scmp.eq.s32.totalorder %s26, 1
      %p49 = por %p47, %p48
      %p51 = scmp.ne.s32.totalorder %s34, %s50
      %p52 = scmp.eq.s32.totalorder %s26, 0
      %p53 = por %p51, %p52
      %s54 = ssub.s32 %s20, %s27
      %p55 = scmp.eq.s32.totalorder %s54, 0
      %s57 = sadd.s32 %s56, 1
      %s58 = scalar_select %p55, %s56, %s57
      %p61 = pneg %p55
      %p62 = scmp.eq.s32.totalorder %s20, 1
      %p63 = por %p61, %p62
      %p64 = scmp.ne.s32.totalorder %s56, %s59
      %p65 = scmp.eq.s32.totalorder %s20, 0
      %p66 = por %p64, %p65
      %p67 = scmp.ne.s32.totalorder %s56, %s59
      %p68 = scmp.eq.s32.totalorder %s25, 1
      %p69 = por %p67, %p68
      %p70 = scmp.ne.s32.totalorder %s59, %s60
      %p71 = scmp.eq.s32.totalorder %s25, 0
      %p72 = por %p70, %p71
      %p73 = scmp.ne.s32.totalorder %s59, %s60
      %p74 = scmp.eq.s32.totalorder %s26, 1
      %p75 = por %p73, %p74
      %p77 = scmp.ne.s32.totalorder %s60, %s76
      %p78 = scmp.eq.s32.totalorder %s26, 0
      %p79 = por %p77, %p78
      %s81 = sadd.s32 %s80, 1
      %p84 = scmp.eq.s32.totalorder %s20, 1
      %p85 = scmp.ne.s32.totalorder %s80, %s82
      %p86 = scmp.eq.s32.totalorder %s20, 0
      %p87 = por %p85, %p86
      %p88 = scmp.ne.s32.totalorder %s80, %s82
      %p89 = scmp.eq.s32.totalorder %s25, 1
      %p90 = por %p88, %p89
      %p91 = scmp.ne.s32.totalorder %s82, %s83
      %p92 = scmp.eq.s32.totalorder %s25, 0
      %p93 = por %p91, %p92
      %p94 = scmp.ne.s32.totalorder %s82, %s83
      %p95 = scmp.eq.s32.totalorder %s26, 1
      %p96 = por %p94, %p95
      %p98 = scmp.ne.s32.totalorder %s83, %s97
      %p99 = scmp.eq.s32.totalorder %s26, 0
      %p100 = por %p98, %p99
      %s102 = sadd.s32 %s101, 1
      %p105 = scmp.eq.s32.totalorder %s20, 1
      %p106 = scmp.ne.s32.totalorder %s101, %s103
      %p107 = scmp.eq.s32.totalorder %s20, 0
      %p108 = por %p106, %p107
      %p109 = scmp.ne.s32.totalorder %s101, %s103
      %p110 = scmp.eq.s32.totalorder %s25, 1
      %p111 = por %p109, %p110
      %p112 = scmp.ne.s32.totalorder %s103, %s104
      %p113 = scmp.eq.s32.totalorder %s25, 0
      %p114 = por %p112, %p113
      %p115 = scmp.ne.s32.totalorder %s103, %s104
      %p116 = scmp.eq.s32.totalorder %s26, 1
      %p117 = por %p115, %p116
      %p119 = scmp.ne.s32.totalorder %s104, %s118
      %p120 = scmp.eq.s32.totalorder %s26, 0
      %p121 = por %p119, %p120
      %s123 = sadd.s32 %s122, 1
      %p126 = scmp.eq.s32.totalorder %s20, 1
      %p127 = scmp.ne.s32.totalorder %s122, %s124
      %p128 = scmp.eq.s32.totalorder %s20, 0
      %p129 = por %p127, %p128
      %p130 = scmp.ne.s32.totalorder %s122, %s124
      %p131 = scmp.eq.s32.totalorder %s25, 1
      %p132 = por %p130, %p131
      %p133 = scmp.ne.s32.totalorder %s124, %s125
      %p134 = scmp.eq.s32.totalorder %s25, 0
      %p135 = por %p133, %p134
      %p136 = scmp.ne.s32.totalorder %s124, %s125
      %p137 = scmp.eq.s32.totalorder %s26, 1
      %p138 = por %p136, %p137
      %p140 = scmp.ne.s32.totalorder %s125, %s139
      %p141 = scmp.eq.s32.totalorder %s26, 0
      %p142 = por %p140, %p141
      %s144 = sadd.s32 %s143, 1
      %p147 = scmp.eq.s32.totalorder %s20, 1
      %p148 = scmp.ne.s32.totalorder %s143, %s145
      %p149 = scmp.eq.s32.totalorder %s20, 0
      %p150 = por %p148, %p149
      %p151 = scmp.ne.s32.totalorder %s143, %s145
      %p152 = scmp.eq.s32.totalorder %s25, 1
      %p153 = por %p151, %p152
      %p154 = scmp.ne.s32.totalorder %s145, %s146
      %p155 = scmp.eq.s32.totalorder %s25, 0
      %p156 = por %p154, %p155
      %p157 = scmp.ne.s32.totalorder %s145, %s146
      %p158 = scmp.eq.s32.totalorder %s26, 1
      %p159 = por %p157, %p158
      %p161 = scmp.ne.s32.totalorder %s146, %s160
      %p162 = scmp.eq.s32.totalorder %s26, 0
      %p163 = por %p161, %p162
      %s164 = ssub.s32 %s20, %s27
      %p165 = scmp.eq.s32.totalorder %s164, 0
      %s167 = sadd.s32 %s166, 1
      %s168 = scalar_select %p165, %s166, %s167
      %p171 = pneg %p165
      %p172 = scmp.eq.s32.totalorder %s20, 1
      %p173 = por %p171, %p172
      %p174 = scmp.ne.s32.totalorder %s166, %s169
      %p175 = scmp.eq.s32.totalorder %s20, 0
      %p176 = por %p174, %p175
      %p177 = scmp.ne.s32.totalorder %s166, %s169
      %p178 = scmp.eq.s32.totalorder %s25, 1
      %p179 = por %p177, %p178
      %p180 = scmp.ne.s32.totalorder %s169, %s170
      %p181 = scmp.eq.s32.totalorder %s25, 0
      %p182 = por %p180, %p181
      %p183 = scmp.ne.s32.totalorder %s169, %s170
      %p184 = scmp.eq.s32.totalorder %s26, 1
      %p185 = por %p183, %p184
      %p187 = scmp.ne.s32.totalorder %s170, %s186
      %p188 = scmp.eq.s32.totalorder %s26, 0
      %p189 = por %p187, %p188
      %p190 = scmp.le.s32.totalorder 1, %s20
      %p191 = scmp.lt.s32.totalorder %s20, 3
      %p192 = pnand %p190, %p191
      %p193 = pneg %p192
      // Predicated region
      $region9: #{fuse_relation_network.1} parent=5 // pred_check
        _
      $region10: #{fuse_relation_network.1} parent=5 // pred_check_branch
        %195 = sbr.rel (%p192) target = $region12
      $region11: #{fuse_relation_network.1} parent=5 // pred_region
        %s196 = ssub.s32 %s20, 1
        // Predicated region
        $region13: #{fuse_relation_network.1} parent=11 // pred_check
          %p197 = pneg %p93
        $region14: #{fuse_relation_network.1} parent=11 // pred_check_branch
          %199 = sbr.rel (%p197) target = $region16
        $region15: #{fuse_relation_network.1} parent=11 // pred_region
          %201 = vsyncadd [#allocation6], 0
          %s202 = sshll.u32 %s2, 4
          %s203 = int_to_ptr.hbm [resolvable:$true] %s202
          %s204 = sshll.u32 [#allocation5], 4
          %s205 = int_to_ptr.vmem [resolvable:$true] %s204
          %210 = dma.hbm_to_vmem [thread:$0]  %s203, 512, %s205, [#allocation6], 128, 128, 8
        $region16: #{fuse_relation_network.1} parent=11 // pred_fallthru
          _
        // Predicated region
        $region17: #{fuse_relation_network.1} parent=11 // pred_check
          %p211 = pneg %p114
        $region18: #{fuse_relation_network.1} parent=11 // pred_check_branch
          %213 = sbr.rel (%p211) target = $region20
        $region19: #{fuse_relation_network.1} parent=11 // pred_region
          %215 = vsyncadd [#allocation6], 0
          %s216 = sshll.u32 %s3, 4
          %s217 = int_to_ptr.hbm [resolvable:$true] %s216
          %s218 = sshll.u32 [#allocation7], 4
          %s219 = int_to_ptr.vmem [resolvable:$true] %s218
          %224 = dma.hbm_to_vmem [thread:$0]  %s217, 512, %s219, [#allocation6], 128, 128, 8
        $region20: #{fuse_relation_network.1} parent=11 // pred_fallthru
          _
        // Predicated region
        $region21: #{fuse_relation_network.1} parent=11 // pred_check
          %p225 = pneg %p135
        $region22: #{fuse_relation_network.1} parent=11 // pred_check_branch
          %227 = sbr.rel (%p225) target = $region24
        $region23: #{fuse_relation_network.1} parent=11 // pred_region
          %229 = vsyncadd [#allocation9], 0
          %s230 = sshll.u32 %s4, 4
          %s231 = int_to_ptr.hbm [resolvable:$true] %s230
          %s232 = sshll.u32 [#allocation8], 4
          %s233 = int_to_ptr.vmem [resolvable:$true] %s232
          %238 = dma.hbm_to_vmem [thread:$0]  %s231, 512, %s233, [#allocation9], 128, 128, 8
        $region24: #{fuse_relation_network.1} parent=11 // pred_fallthru
          _
        // Predicated region
        $region25: #{fuse_relation_network.1} parent=11 // pred_check
          %p239 = pneg %p156
        $region26: #{fuse_relation_network.1} parent=11 // pred_check_branch
          %241 = sbr.rel (%p239) target = $region28
        $region27: #{fuse_relation_network.1} parent=11 // pred_region
          _
        $region28: #{fuse_relation_network.1} parent=11 // pred_fallthru
          _
      $region12: #{fuse_relation_network.1} parent=5 // pred_fallthru
        _
      %p242 = scmp.lt.s32.totalorder %s20, 2
      // Predicated region
      $region29: #{fuse_relation_network.1} parent=5 // pred_check
        %p243 = pneg %p242
      $region30: #{fuse_relation_network.1} parent=5 // pred_check_branch
        %245 = sbr.rel (%p243) target = $region32
      $region31: #{fuse_relation_network.1} parent=5 // pred_region
        // Predicated region
        $region33: #{fuse_relation_network.1} parent=31 // pred_check
          %p246 = pneg %p40
        $region34: #{fuse_relation_network.1} parent=31 // pred_check_branch
          %248 = sbr.rel (%p246) target = $region36
        $region35: #{fuse_relation_network.1} parent=31 // pred_region
          %s249 = sand.u32 %s30, 1
          %s250 = scalar_lea.sflag [#allocation3], %s249
          %s251 = sand.u32 %s30, 1
          %s252 = smul.addr %s251, 8
          %s253 = scalar_lea.vmem [#allocation2], %s252
          %255 = vsyncadd %s250, 0
          %s256 = smul.addr %s20, 8
          %s257 = scalar_lea.hbm %s0, %s256
          %s259 = sshll.u32 %s257, 4
          %s260 = int_to_ptr.hbm [resolvable:$true] %s259
          %s261 = sshll.u32 %s253, 4
          %s262 = int_to_ptr.vmem [resolvable:$true] %s261
          %264 = dma.hbm_to_vmem [thread:$0]  %s260, 128, %s262, %s250
        $region36: #{fuse_relation_network.1} parent=31 // pred_fallthru
          _
        // Predicated region
        $region37: #{fuse_relation_network.1} parent=31 // pred_check
          %p265 = pneg %p66
        $region38: #{fuse_relation_network.1} parent=31 // pred_check_branch
          %267 = sbr.rel (%p265) target = $region40
        $region39: #{fuse_relation_network.1} parent=31 // pred_region
          %p268 = scmp.lt.s32.totalorder %s20, 1
          %s269 = scalar_select %p268, %s20, 1
          %s270 = scalar_lea.vmem %s1, %s269
        $region40: #{fuse_relation_network.1} parent=31 // pred_fallthru
          _
      $region32: #{fuse_relation_network.1} parent=5 // pred_fallthru
        _
      %p271 = scmp.le.s32.totalorder 1, %s20
      %p272 = scmp.lt.s32.totalorder %s20, 3
      %p273 = pnand %p271, %p272
      %p274 = pneg %p273
      // Predicated region
      $region41: #{fuse_relation_network.1} parent=5 // pred_check
        _
      $region42: #{fuse_relation_network.1} parent=5 // pred_check_branch
        %276 = sbr.rel (%p273) target = $region44
      $region43: #{fuse_relation_network.1} parent=5 // pred_region
        %s277 = ssub.s32 %s20, 1
        %s278 = sand.u32 %s33, 1
        %s279 = scalar_lea.sflag [#allocation3], %s278
        %s280 = sand.u32 %s33, 1
        %s281 = smul.addr %s280, 8
        %s282 = scalar_lea.vmem [#allocation2], %s281
        // Predicated region
        $region45: #{fuse_relation_network.1} parent=43 // pred_check
          %p283 = pneg %p46
        $region46: #{fuse_relation_network.1} parent=43 // pred_check_branch
          %285 = sbr.rel (%p283) target = $region48
        $region47: #{fuse_relation_network.1} parent=43 // pred_region
          %287 = dma.done %s279, 128
        $region48: #{fuse_relation_network.1} parent=43 // pred_fallthru
          _
        // Predicated region
        $region49: #{fuse_relation_network.1} parent=43 // pred_check
          %p288 = pneg %p93
        $region50: #{fuse_relation_network.1} parent=43 // pred_check_branch
          %290 = sbr.rel (%p288) target = $region52
        $region51: #{fuse_relation_network.1} parent=43 // pred_region
          %292 = dma.done [#allocation6], 512
        $region52: #{fuse_relation_network.1} parent=43 // pred_fallthru
          _
        // Predicated region
        $region53: #{fuse_relation_network.1} parent=43 // pred_check
          %p293 = pneg %p114
        $region54: #{fuse_relation_network.1} parent=43 // pred_check_branch
          %295 = sbr.rel (%p293) target = $region56
        $region55: #{fuse_relation_network.1} parent=43 // pred_region
          %297 = dma.done [#allocation6], 512
        $region56: #{fuse_relation_network.1} parent=43 // pred_fallthru
          _
        // Predicated region
        $region57: #{fuse_relation_network.1} parent=43 // pred_check
          %p298 = pneg %p135
        $region58: #{fuse_relation_network.1} parent=43 // pred_check_branch
          %300 = sbr.rel (%p298) target = $region60
        $region59: #{fuse_relation_network.1} parent=43 // pred_region
          %302 = dma.done [#allocation9], 512
        $region60: #{fuse_relation_network.1} parent=43 // pred_fallthru
          _
        %s303 = sand.u32 %s33, 1
        %s304 = scalar_lea.sflag [#allocation3], %s303
        %s305 = sand.u32 %s33, 1
        %s306 = smul.addr %s305, 8
        %s307 = scalar_lea.vmem [#allocation2], %s306
        %p308 = pneg %p46
        %p309 = pneg %p43
        %p310 = scmp.lt.s32.totalorder %s25, 1
        %s311 = scalar_select %p310, %s25, 1
        %s312 = scalar_lea.vmem %s1, %s311
        %p313 = pneg %p72
        %p314 = pneg %p69
        %p315 = pneg %p93
        %p316 = pneg %p90
        %p317 = pneg %p114
        %p318 = pneg %p111
        %p319 = pneg %p135
        %p320 = pneg %p132
        %p321 = pneg %p156
        %p322 = pneg %p153
        %p323 = pneg %p182
        %p324 = pneg %p179
        %s325 = sand.u32 %s169, 1
        %s326 = scalar_lea.sflag [#allocation4], %s325
        %s327 = sand.u32 %s169, 1
        %s328 = smul.addr %s327, 8
        %s329 = scalar_lea.vmem [#allocation10], %s328
        %p330 = scmp.lt.s32.totalorder %s25, 1
        %s331 = scalar_select %p330, %s25, 1
        %s332 = scalar_lea.vmem %s1, %s331
        %v333 = vld [vmem:[%s282] sm:$0xff]
        %vm334 = vcmask 261120
        %v335 = vsel %vm334, %v333, 0.0
        %v336 = vrot.slane %v335, 4
        %v337 = vadd.f32 %v335, %v336
        %v338 = vrot.slane %v337, 2
        %v339 = vadd.f32 %v337, %v338
        %v340 = vrot.slane %v339, 1
        %v341 = vadd.f32 %v339, %v340
        %v342 = vrcp.pop 8.0
        %v343 = vmul.f32 8.0, %v342
        %v344 = vsub.f32 1.0, %v343
        %v345 = vmul.f32 %v342, %v344
        %v346 = vadd.f32 %v342, %v345
        %vm347 = vweird.f32 %v342
        %v348 = vsel %vm347, %v342, %v346
        %v349 = vmul.f32 %v341, %v348
        %v350 = vld [vmem:[%s332] sm:$0x1]
        %v351 = vld [vmem:[#allocation7] sm:$0xff]
        %v352 = vld [vmem:[#allocation7 + $0x8] sm:$0xff]
        %v353 = vld [vmem:[#allocation7 + $0x10] sm:$0xff]
        %v354 = vld [vmem:[#allocation7 + $0x18] sm:$0xff]
        %v355 = vld [vmem:[#allocation8] sm:$0xff]
        %v356 = vld [vmem:[#allocation8 + $0x8] sm:$0xff]
        %v357 = vld [vmem:[#allocation8 + $0x10] sm:$0xff]
        %v358 = vld [vmem:[#allocation8 + $0x18] sm:$0xff]
        %v360 = vsel %vm334, %v350, 0
        %362 = vmatpush.msra.mxu0 0.0
        %363 = vmatpush.msra.mxu0 0.0
        %364 = vmatpush.msra.mxu0 0.0
        %365 = vmatpush.msra.mxu0 0.0
        %366 = vmatpush.msra.mxu0 0.0
        %367 = vmatpush.msra.mxu0 0.0
        %368 = vmatpush.msra.mxu0 0.0
        %369 = vmatpush.msra.mxu0 0.0
        %370 = vmatpush.msra.mxu0 0.0
        %371 = vmatpush.msra.mxu0 0.0
        %372 = vmatpush.msra.mxu0 0.0
        %373 = vmatpush.msra.mxu0 0.0
        %374 = vmatpush.msra.mxu0 %v358
        %375 = vmatpush.msra.mxu0 %v357
        %376 = vmatpush.msra.mxu0 %v356
        %377 = vmatpush.msra.mxu0 %v355
        %378 = vmatmul.f32.gmra.mxu0 %v360
        %v379 = vpop.f32.mrf.mxu0
        %v380 = vadd.f32 0.0, %v379
        %381 = vdwg.mxu0
        %v383 = vsel %vm334, %v349, 0
        %385 = vmatpush.msra.mxu0 0.0
        %386 = vmatpush.msra.mxu0 0.0
        %387 = vmatpush.msra.mxu0 0.0
        %388 = vmatpush.msra.mxu0 0.0
        %389 = vmatpush.msra.mxu0 0.0
        %390 = vmatpush.msra.mxu0 0.0
        %391 = vmatpush.msra.mxu0 0.0
        %392 = vmatpush.msra.mxu0 0.0
        %393 = vmatpush.msra.mxu0 0.0
        %394 = vmatpush.msra.mxu0 0.0
        %395 = vmatpush.msra.mxu0 0.0
        %396 = vmatpush.msra.mxu0 0.0
        %397 = vmatpush.msra.mxu0 %v354
        %398 = vmatpush.msra.mxu0 %v353
        %399 = vmatpush.msra.mxu0 %v352
        %400 = vmatpush.msra.mxu0 %v351
        %401 = vmatmul.f32.gmra.mxu0 %v383
        %v402 = vpop.f32.mrf.mxu0
        %v403 = vadd.f32 %v380, %v402
        %404 = vdwg.mxu0
        %v405 = vld [vmem:[%s5] sm:$0x1]
        %v406 = vadd.f32 %v403, %v405
        %v407 = vld [vmem:[#allocation5] sm:$0xff]
        %v408 = vld [vmem:[#allocation5 + $0x8] sm:$0xff]
        %v409 = vld [vmem:[#allocation5 + $0x10] sm:$0xff]
        %v410 = vld [vmem:[#allocation5 + $0x18] sm:$0xff]
        %v411 = vperm.slane %v406, 0
        %v413 = vsel %vm334, %v333, 0
        %415 = vmatpush.msra.mxu0 0.0
        %416 = vmatpush.msra.mxu0 0.0
        %417 = vmatpush.msra.mxu0 0.0
        %418 = vmatpush.msra.mxu0 0.0
        %419 = vmatpush.msra.mxu0 0.0
        %420 = vmatpush.msra.mxu0 0.0
        %421 = vmatpush.msra.mxu0 0.0
        %422 = vmatpush.msra.mxu0 0.0
        %423 = vmatpush.msra.mxu0 0.0
        %424 = vmatpush.msra.mxu0 0.0
        %425 = vmatpush.msra.mxu0 0.0
        %426 = vmatpush.msra.mxu0 0.0
        %427 = vmatpush.msra.mxu0 %v410
        %428 = vmatpush.msra.mxu0 %v409
        %429 = vmatpush.msra.mxu0 %v408
        %430 = vmatpush.msra.mxu0 %v407
        %431 = vmatmul.f32.gmra.mxu0 %v413
        %v432 = vpop.f32.mrf.mxu0
        %v433 = vadd.f32 %v411, %v432
        %434 = vdwg.mxu0
        %v435 = vmax.f32 %v433, 0.0
        %436 = vst.msk [vmem:[%s329] sm:$0xff] %vm334, %v435
        %s437 = sand.u32 %s169, 1
        %s438 = scalar_lea.sflag [#allocation4], %s437
        %s439 = sand.u32 %s169, 1
        %s440 = smul.addr %s439, 8
        %s441 = scalar_lea.vmem [#allocation10], %s440
        // Predicated region
        $region61: #{fuse_relation_network.1} parent=43 // pred_check
          %p442 = pneg %p179
        $region62: #{fuse_relation_network.1} parent=43 // pred_check_branch
          %444 = sbr.rel (%p442) target = $region64
        $region63: #{fuse_relation_network.1} parent=43 // pred_region
          %446 = vsyncadd %s438, 0
          %s447 = smul.addr %s25, 8
          %s448 = scalar_lea.hbm %s6, %s447
          %s450 = sshll.u32 %s441, 4
          %s451 = int_to_ptr.vmem [resolvable:$true] %s450
          %s452 = sshll.u32 %s448, 4
          %s453 = int_to_ptr.hbm [resolvable:$true] %s452
          %455 = dma.vmem_to_hbm [thread:$0]  %s451, 128, %s453, %s438
        $region64: #{fuse_relation_network.1} parent=43 // pred_fallthru
          _
      $region44: #{fuse_relation_network.1} parent=5 // pred_fallthru
        _
      %p456 = scmp.le.s32.totalorder 2, %s20
      // Predicated region
      $region65: #{fuse_relation_network.1} parent=5 // pred_check
        %p457 = pneg %p456
      $region66: #{fuse_relation_network.1} parent=5 // pred_check_branch
        %459 = sbr.rel (%p457) target = $region68
      $region67: #{fuse_relation_network.1} parent=5 // pred_region
        %s460 = ssub.s32 %s20, 2
        // Predicated region
        $region69: #{fuse_relation_network.1} parent=67 // pred_check
          %p461 = pneg %p185
        $region70: #{fuse_relation_network.1} parent=67 // pred_check_branch
          %463 = sbr.rel (%p461) target = $region72
        $region71: #{fuse_relation_network.1} parent=67 // pred_region
          %s464 = sand.u32 %s170, 1
          %s465 = scalar_lea.sflag [#allocation4], %s464
          %s466 = sand.u32 %s170, 1
          %s467 = smul.addr %s466, 8
          %s468 = scalar_lea.vmem [#allocation10], %s467
          %470 = dma.done %s465, 128
        $region72: #{fuse_relation_network.1} parent=67 // pred_fallthru
          _
      $region68: #{fuse_relation_network.1} parent=5 // pred_fallthru
        _
    $region6: #{fuse_relation_network.1} parent=1 // loop_footer
      %s24 = sadd.s32 1, %s20
    $region7: #{fuse_relation_network.1} parent=1 // loop_footer_branch
      %19 = sbr.rel target = $region3
    $region8: #{fuse_relation_network.1} parent=1 // loop_exit
      _
    %471 = vsyncpa [#allocation3], 1
    %s472 = scalar_lea.sflag [#allocation3], 1
    %473 = vsyncpa %s472, 1
    %474 = vsyncpa [#allocation6], 1
    %475 = vsyncpa [#allocation9], 1
    %476 = vsyncpa [#allocation4], 1
    %s477 = scalar_lea.sflag [#allocation4], 1
    %478 = vsyncpa %s477, 1

</llo_original>
